<compile_context>
chip_gen: v6e
topology: v6e:2x2x1
jax: 0.10.0
libtpu: 0.0.40
codegen_flags: <defaults>
</compile_context>

<pallas_src>
import jax
import jax.numpy as jnp
from jax import lax
from jax.experimental import pallas as pl
from jax.experimental.pallas import tpu as pltpu


def _round_up(n, m):
    return ((n + m - 1) // m) * m


def _onehot_gather_kernel(uidx_ref, iidx_ref, w_ref, h_ref, u_out_ref, v_out_ref):
    """Gather one TB-row block of user/item embeddings via one-hot MXU matmuls.

    uidx_ref, iidx_ref : (TB, 1) int32   VMEM-blocked index columns
    w_ref              : (num_users, k)  whole table, VMEM-resident (untiled)
    h_ref              : (num_items, k)  whole table, VMEM-resident (untiled)
    u_out_ref          : (TB, k)         user-embedding block (sublane-dense)
    v_out_ref          : (TB, k)         item-embedding block (sublane-dense)
    """
    tb = u_out_ref.shape[0]
    num_users = w_ref.shape[0]
    num_items = h_ref.shape[0]

    uid = uidx_ref[...]                                   # (TB, 1)
    iid = iidx_ref[...]                                   # (TB, 1)

    # One-hot selection matrices (VPU compare); gather itself runs on the MXU.
    u_oh = lax.broadcasted_iota(jnp.int32, (tb, num_users), 1) == uid
    i_oh = lax.broadcasted_iota(jnp.int32, (tb, num_items), 1) == iid

    u = jnp.dot(u_oh.astype(w_ref.dtype), w_ref[...],
                preferred_element_type=jnp.float32)
    v = jnp.dot(i_oh.astype(h_ref.dtype), h_ref[...],
                preferred_element_type=jnp.float32)

    # Dense (TB, k) stores, lane offset 0 for both halves.
    u_out_ref[...] = u.astype(u_out_ref.dtype)
    v_out_ref[...] = v.astype(v_out_ref.dtype)


def embedding_sharing_forward(x, W, H, is_training=False, block_b=1024):
    """Pallas equivalent of Embedding_Sharing.forward.

    x : int array [B, 2]  (user_idx, item_idx)
    W : float [num_users, k]
    H : float [num_items, k]
    """
    B = int(x.shape[0])
    num_users, k = W.shape
    num_items, k_h = H.shape
    assert k == k_h, "W and H must share embedding_k"

    # Promote both tables to a common dtype up front.
    out_dtype = jnp.result_type(W.dtype, H.dtype)
    W = W.astype(out_dtype)
    H = H.astype(out_dtype)

    # Clamp indices: out-of-range ids never select garbage (PyTorch would raise;
    # here it is a safety guard).
    user_idx = jnp.clip(x[:, 0].astype(jnp.int32), 0, num_users - 1)
    item_idx = jnp.clip(x[:, 1].astype(jnp.int32), 0, num_items - 1)

    # Batch blocking: TB rows per grid step, multiple of 128 so index blocks are
    # sublane-aligned and per-grid-step overhead is amortized.
    TB = min(_round_up(B, 128), _round_up(block_b, 128))
    B_pad = _round_up(B, TB)
    pad = B_pad - B
    if pad:
        # Pad with index 0 (always in-bounds); padded output rows are dropped.
        user_idx = jnp.pad(user_idx, (0, pad))
        item_idx = jnp.pad(item_idx, (0, pad))
    num_blocks = B_pad // TB

    user_idx = user_idx.reshape(B_pad, 1)
    item_idx = item_idx.reshape(B_pad, 1)

    # ---- VMEM budget for the tables-resident one-hot path ----------------------
    itemsize = jnp.dtype(out_dtype).itemsize
    lanes_k = _round_up(k, 128)
    # Untiled memory_space=VMEM operands: a single resident copy each.
    table_bytes = (_round_up(num_users, 8) + _round_up(num_items, 8)) * lanes_k * itemsize
    # Blocked index / output tiles are double-buffered by the Pallas pipeline.
    idx_bytes = 2 * 2 * TB * 128 * 4
    out_bytes = 2 * 2 * _round_up(TB, 8) * lanes_k * itemsize
    # One-hot intermediates live in vregs/VMEM scratch during the matmuls.
    onehot_bytes = TB * (_round_up(num_users, 128) + _round_up(num_items, 128)) * itemsize
    vmem_needed = table_bytes + idx_bytes + out_bytes + onehot_bytes

    try:
        phys_vmem = int(pltpu.get_tpu_info().vmem_capacity_bytes)
    except Exception:
        phys_vmem = 64 << 20                 # conservative: v7x per-TC physical VMEM
    vmem_budget = min(phys_vmem // 2, 96 << 20)
    assert vmem_needed <= vmem_budget, (
        "embedding tables too large for the VMEM-resident one-hot gather path "
        f"(need {vmem_needed} B, budget {vmem_budget} B)"
    )
    # TODO(synk): for tables larger than the VMEM budget (esp. v7x, 64 MiB/TC),
    # fall back to an HBM (memory_space=pl.ANY) row-gather with >=4 outstanding
    # pltpu.make_async_copy row DMAs into a double-buffered VMEM staging buffer.
    # TODO(synk): for k << 128, pack G = 128 // k table rows per 128-lane group
    # to cut table VMEM residency and output lane padding by up to 128/k.

    grid_spec = pltpu.PrefetchScalarGridSpec(
        num_scalar_prefetch=0,
        grid=(num_blocks,),
        in_specs=[
            pl.BlockSpec((TB, 1), lambda i: (i, 0)),               # user indices
            pl.BlockSpec((TB, 1), lambda i: (i, 0)),               # item indices
            pl.BlockSpec(memory_space=pltpu.MemorySpace.VMEM),     # W (whole table)
            pl.BlockSpec(memory_space=pltpu.MemorySpace.VMEM),     # H (whole table)
        ],
        out_specs=(
            pl.BlockSpec((TB, k), lambda i: (i, 0)),               # U_emb block
            pl.BlockSpec((TB, k), lambda i: (i, 0)),               # V_emb block
        ),
    )

    u_pad, v_pad = pl.pallas_call(
        _onehot_gather_kernel,
        out_shape=(
            jax.ShapeDtypeStruct((B_pad, k), out_dtype),
            jax.ShapeDtypeStruct((B_pad, k), out_dtype),
        ),
        grid_spec=grid_spec,
        compiler_params=pltpu.CompilerParams(
            # Batch blocks are independent -> shard across TCs on v7x.
            dimension_semantics=("parallel",),
            vmem_limit_bytes=int(vmem_budget),
        ),
    )(user_idx, item_idx, W, H)

    u_emb = u_pad[:B]                        # (B, k) drop padded rows
    v_emb = v_pad[:B]                        # (B, k)
    z_emb = jnp.concatenate([u_emb, v_emb], axis=1)   # (B, 2k)

    # TODO(synk): pallas_call is not differentiable; training-time gradients
    # w.r.t. W/H (embedding scatter-add) need a custom_vjp / backward kernel.
    if is_training:
        return jnp.squeeze(z_emb), u_emb, v_emb
    return jnp.squeeze(z_emb)


if __name__ == "__main__":
    # Deterministic synthetic parameters / inputs (torch.nn.Embedding default
    # init is N(0, 1)).
    num_users = 32
    num_items = 48
    embedding_k = 4
    batch = 8

    key = jax.random.PRNGKey(0)
    k_w, k_h, k_u, k_i = jax.random.split(key, 4)

    W = jax.random.normal(k_w, (num_users, embedding_k), dtype=jnp.float32)
    H = jax.random.normal(k_h, (num_items, embedding_k), dtype=jnp.float32)

    user_ids = jax.random.randint(k_u, (batch,), 0, num_users, dtype=jnp.int32)
    item_ids = jax.random.randint(k_i, (batch,), 0, num_items, dtype=jnp.int32)
    x = jnp.stack([user_ids, item_ids], axis=1)  # [B, 2]

    # Inference path.
    z = embedding_sharing_forward(x, W, H, is_training=False)
    z = jax.block_until_ready(z)

    z_ref = jnp.concatenate([W[user_ids], H[item_ids]], axis=1)
    assert z.shape == (batch, 2 * embedding_k)
    assert jnp.allclose(z, z_ref, atol=1e-6), "mismatch vs. reference gather"

    # Training path (z, U_emb, V_emb).
    z_t, u_t, v_t = embedding_sharing_forward(x, W, H, is_training=True)
    jax.block_until_ready((z_t, u_t, v_t))
    assert jnp.allclose(z_t, z_ref, atol=1e-6)
    assert jnp.allclose(u_t, W[user_ids], atol=1e-6)
    assert jnp.allclose(v_t, H[item_ids], atol=1e-6)

    print("KERNEL_OK")
</pallas_src>

<mosaic_0001>
module attributes {stable_mosaic.version = 11 : i64} {
  func.func @_onehot_gather_kernel(%arg0: i32, %arg1: memref<128x1xi32, #tpu.memory_space<vmem>>, %arg2: memref<128x1xi32, #tpu.memory_space<vmem>>, %arg3: memref<32x4xf32, #tpu.memory_space<vmem>>, %arg4: memref<48x4xf32, #tpu.memory_space<vmem>>, %arg5: memref<128x4xf32, #tpu.memory_space<vmem>>, %arg6: memref<128x4xf32, #tpu.memory_space<vmem>>) attributes {dimension_semantics = [#tpu.dimension_semantics<parallel>], iteration_bounds = array<i64: 1>, scalar_prefetch = 0 : i64, scratch_operands = 0 : i64, tpu.core_type = #tpu.core_type<tc>, window_params = [{transform_indices = @transform_0, window_bounds = array<i64: 128, 1>}, {transform_indices = @transform_1, window_bounds = array<i64: 128, 1>}, {pipeline_mode = #tpu.pipeline_mode<synchronous>, transform_indices = @transform_2, window_bounds = array<i64: 32, 4>}, {pipeline_mode = #tpu.pipeline_mode<synchronous>, transform_indices = @transform_3, window_bounds = array<i64: 48, 4>}, {transform_indices = @transform_4, window_bounds = array<i64: 128, 4>}, {transform_indices = @transform_5, window_bounds = array<i64: 128, 4>}]} {
    %c0 = arith.constant 0 : index
    %c0_0 = arith.constant 0 : index
    %0 = vector.load %arg1[%c0, %c0_0] : memref<128x1xi32, #tpu.memory_space<vmem>>, vector<128x1xi32>
    %c0_1 = arith.constant 0 : index
    %c0_2 = arith.constant 0 : index
    %1 = vector.load %arg2[%c0_1, %c0_2] : memref<128x1xi32, #tpu.memory_space<vmem>>, vector<128x1xi32>
    %2 = tpu.iota {dimensions = array<i32: 1>} : vector<128x32xi32>
    %3 = vector.broadcast %0 : vector<128x1xi32> to vector<128x32xi32>
    %4 = arith.cmpi eq, %2, %3 : vector<128x32xi32>
    %5 = tpu.iota {dimensions = array<i32: 1>} : vector<128x48xi32>
    %6 = vector.broadcast %1 : vector<128x1xi32> to vector<128x48xi32>
    %7 = arith.cmpi eq, %5, %6 : vector<128x48xi32>
    %8 = arith.extui %4 : vector<128x32xi1> to vector<128x32xi32>
    %9 = arith.sitofp %8 : vector<128x32xi32> to vector<128x32xf32>
    %c0_3 = arith.constant 0 : index
    %c0_4 = arith.constant 0 : index
    %10 = vector.load %arg3[%c0_3, %c0_4] : memref<32x4xf32, #tpu.memory_space<vmem>>, vector<32x4xf32>
    %cst = arith.constant dense<0.000000e+00> : vector<128x4xf32>
    %11 = tpu.matmul %9, %10, %cst {dimension_numbers = #tpu.dot_dimension_numbers<[1], [0], [0], [1], [0, 0, 1, 1], [], []>} : vector<128x32xf32>, vector<32x4xf32>, vector<128x4xf32> -> vector<128x4xf32>
    %12 = arith.extui %7 : vector<128x48xi1> to vector<128x48xi32>
    %13 = arith.sitofp %12 : vector<128x48xi32> to vector<128x48xf32>
    %c0_5 = arith.constant 0 : index
    %c0_6 = arith.constant 0 : index
    %14 = vector.load %arg4[%c0_5, %c0_6] : memref<48x4xf32, #tpu.memory_space<vmem>>, vector<48x4xf32>
    %cst_7 = arith.constant dense<0.000000e+00> : vector<128x4xf32>
    %15 = tpu.matmul %13, %14, %cst_7 {dimension_numbers = #tpu.dot_dimension_numbers<[1], [0], [0], [1], [0, 0, 1, 1], [], []>} : vector<128x48xf32>, vector<48x4xf32>, vector<128x4xf32> -> vector<128x4xf32>
    %c0_8 = arith.constant 0 : index
    %c0_9 = arith.constant 0 : index
    %16 = vector.load %arg5[%c0_8, %c0_9] : memref<128x4xf32, #tpu.memory_space<vmem>>, vector<128x4xf32>
    tpu.vector_store %arg5[%c0_8, %c0_9], %11 {strides = array<i32>} : memref<128x4xf32, #tpu.memory_space<vmem>>, vector<128x4xf32>,
    %c0_10 = arith.constant 0 : index
    %c0_11 = arith.constant 0 : index
    %17 = vector.load %arg6[%c0_10, %c0_11] : memref<128x4xf32, #tpu.memory_space<vmem>>, vector<128x4xf32>
    tpu.vector_store %arg6[%c0_10, %c0_11], %15 {strides = array<i32>} : memref<128x4xf32, #tpu.memory_space<vmem>>, vector<128x4xf32>,
    return
  }
  func.func @transform_0(%arg0: i32) -> (i32, i32) {
    %c0_i32 = arith.constant 0 : i32
    %c0_i32_0 = arith.constant 0 : i32
    return %arg0, %c0_i32 : i32, i32
  }
  func.func @transform_1(%arg0: i32) -> (i32, i32) {
    %c0_i32 = arith.constant 0 : i32
    %c0_i32_0 = arith.constant 0 : i32
    return %arg0, %c0_i32 : i32, i32
  }
  func.func @transform_2(%arg0: i32) -> (i32, i32) {
    %c0_i32 = arith.constant 0 : i32
    %c0_i32_0 = arith.constant 0 : i32
    %c0_i32_1 = arith.constant 0 : i32
    return %c0_i32, %c0_i32_0 : i32, i32
  }
  func.func @transform_3(%arg0: i32) -> (i32, i32) {
    %c0_i32 = arith.constant 0 : i32
    %c0_i32_0 = arith.constant 0 : i32
    %c0_i32_1 = arith.constant 0 : i32
    return %c0_i32, %c0_i32_0 : i32, i32
  }
  func.func @transform_4(%arg0: i32) -> (i32, i32) {
    %c0_i32 = arith.constant 0 : i32
    %c0_i32_0 = arith.constant 0 : i32
    return %arg0, %c0_i32 : i32, i32
  }
  func.func @transform_5(%arg0: i32) -> (i32, i32) {
    %c0_i32 = arith.constant 0 : i32
    %c0_i32_0 = arith.constant 0 : i32
    return %arg0, %c0_i32 : i32, i32
  }
}

</mosaic_0001>

<llo_original>
// kernel: tpu_custom_call.1
$region0: #{tpu_custom_call.1}
  #allocation0 [shape = 'u32[]', space=smem, size = 0x4, offset = 0x4, fixed_abs, tag = 'smem constant byte address 0x4 - core index']
  #allocation1 [shape = 'u32[144,128]{1,0:T(1,128)}', space=vmem, size = 0x12000, scoped, tag = 'internal scratch']
  %s0 = inlined_call_operand.vmem [shape: s32[128,1], index: 0, kind: input, shape index: {}]
  %s1 = inlined_call_operand.vmem [shape: s32[128,1], index: 1, kind: input, shape index: {}]
  %s2 = inlined_call_operand.vmem [shape: f32[32,4], index: 2, kind: input, shape index: {}]
  %s3 = inlined_call_operand.vmem [shape: f32[48,4], index: 3, kind: input, shape index: {}]
  %s4 = inlined_call_operand.vmem [shape: f32[128,4], index: 4, kind: output, shape index: {0}]
  %s5 = inlined_call_operand.vmem [shape: f32[128,4], index: 5, kind: output, shape index: {1}]
  %6 = xla_tuple %s4, %s5
  %s7 = sld [smem:[#allocation0]]
  $region34: #{tpu_custom_call.1} parent=0
    _
  %s9 = ssub.s32 1, %s7
  %s10 = scalar_select 0, %s9, %s7
  // Predicated region
  $region2: #{tpu_custom_call.1} parent=0 // pred_check
    _
  $region3: #{tpu_custom_call.1} parent=0 // pred_check_branch
    %12 = sbr.rel (0) target = $region5
  $region4: #{tpu_custom_call.1} parent=0 // pred_region
    _
  $region5: #{tpu_custom_call.1} parent=0 // pred_fallthru
    _
  // Predicated region
  $region6: #{tpu_custom_call.1} parent=0 // pred_check
    _
  $region7: #{tpu_custom_call.1} parent=0 // pred_check_branch
    %14 = sbr.rel (0) target = $region9
  $region8: #{tpu_custom_call.1} parent=0 // pred_region
    _
  $region9: #{tpu_custom_call.1} parent=0 // pred_fallthru
    _
  // Predicated region
  $region10: #{tpu_custom_call.1} parent=0 // pred_check
    _
  $region11: #{tpu_custom_call.1} parent=0 // pred_check_branch
    %16 = sbr.rel (0) target = $region13
  $region12: #{tpu_custom_call.1} parent=0 // pred_region
    _
  $region13: #{tpu_custom_call.1} parent=0 // pred_fallthru
    _
  // Predicated region
  $region14: #{tpu_custom_call.1} parent=0 // pred_check
    _
  $region15: #{tpu_custom_call.1} parent=0 // pred_check_branch
    %18 = sbr.rel (0) target = $region17
  $region16: #{tpu_custom_call.1} parent=0 // pred_region
    _
  $region17: #{tpu_custom_call.1} parent=0 // pred_fallthru
    _
  %v19 = vld [vmem:[%s0] sm:$0xff]
  %v20 = vld [vmem:[%s0 + $0x8] sm:$0xff]
  %v21 = vld [vmem:[%s0 + $0x10] sm:$0xff]
  %v22 = vld [vmem:[%s0 + $0x18] sm:$0xff]
  %v23 = vld [vmem:[%s0 + $0x20] sm:$0xff]
  %v24 = vld [vmem:[%s0 + $0x28] sm:$0xff]
  %v25 = vld [vmem:[%s0 + $0x30] sm:$0xff]
  %v26 = vld [vmem:[%s0 + $0x38] sm:$0xff]
  %v27 = vld [vmem:[%s0 + $0x40] sm:$0xff]
  %v28 = vld [vmem:[%s0 + $0x48] sm:$0xff]
  %v29 = vld [vmem:[%s0 + $0x50] sm:$0xff]
  %v30 = vld [vmem:[%s0 + $0x58] sm:$0xff]
  %v31 = vld [vmem:[%s0 + $0x60] sm:$0xff]
  %v32 = vld [vmem:[%s0 + $0x68] sm:$0xff]
  %v33 = vld [vmem:[%s0 + $0x70] sm:$0xff]
  %v34 = vld [vmem:[%s0 + $0x78] sm:$0xff]
  %v35 = vld [vmem:[%s1] sm:$0xff]
  %v36 = vld [vmem:[%s1 + $0x8] sm:$0xff]
  %v37 = vld [vmem:[%s1 + $0x10] sm:$0xff]
  %v38 = vld [vmem:[%s1 + $0x18] sm:$0xff]
  %v39 = vld [vmem:[%s1 + $0x20] sm:$0xff]
  %v40 = vld [vmem:[%s1 + $0x28] sm:$0xff]
  %v41 = vld [vmem:[%s1 + $0x30] sm:$0xff]
  %v42 = vld [vmem:[%s1 + $0x38] sm:$0xff]
  %v43 = vld [vmem:[%s1 + $0x40] sm:$0xff]
  %v44 = vld [vmem:[%s1 + $0x48] sm:$0xff]
  %v45 = vld [vmem:[%s1 + $0x50] sm:$0xff]
  %v46 = vld [vmem:[%s1 + $0x58] sm:$0xff]
  %v47 = vld [vmem:[%s1 + $0x60] sm:$0xff]
  %v48 = vld [vmem:[%s1 + $0x68] sm:$0xff]
  %v49 = vld [vmem:[%s1 + $0x70] sm:$0xff]
  %v50 = vld [vmem:[%s1 + $0x78] sm:$0xff]
  %v51 = vlaneseq
  %v52 = vand.u32 %v51, 127
  %53 = vset.pattern.permute.xlu0 0
  %54 = vperm.xlu0 %53, %v19
  %v55 = vpop.permute.xlu0 %54
  %56 = vset.pattern.permute.xlu0 0
  %57 = vperm.xlu0 %56, %v20
  %v58 = vpop.permute.xlu0 %57
  %59 = vset.pattern.permute.xlu0 0
  %60 = vperm.xlu0 %59, %v21
  %v61 = vpop.permute.xlu0 %60
  %62 = vset.pattern.permute.xlu0 0
  %63 = vperm.xlu0 %62, %v22
  %v64 = vpop.permute.xlu0 %63
  %65 = vset.pattern.permute.xlu0 0
  %66 = vperm.xlu0 %65, %v23
  %v67 = vpop.permute.xlu0 %66
  %68 = vset.pattern.permute.xlu0 0
  %69 = vperm.xlu0 %68, %v24
  %v70 = vpop.permute.xlu0 %69
  %71 = vset.pattern.permute.xlu0 0
  %72 = vperm.xlu0 %71, %v25
  %v73 = vpop.permute.xlu0 %72
  %74 = vset.pattern.permute.xlu0 0
  %75 = vperm.xlu0 %74, %v26
  %v76 = vpop.permute.xlu0 %75
  %77 = vset.pattern.permute.xlu0 0
  %78 = vperm.xlu0 %77, %v27
  %v79 = vpop.permute.xlu0 %78
  %80 = vset.pattern.permute.xlu0 0
  %81 = vperm.xlu0 %80, %v28
  %v82 = vpop.permute.xlu0 %81
  %83 = vset.pattern.permute.xlu0 0
  %84 = vperm.xlu0 %83, %v29
  %v85 = vpop.permute.xlu0 %84
  %86 = vset.pattern.permute.xlu0 0
  %87 = vperm.xlu0 %86, %v30
  %v88 = vpop.permute.xlu0 %87
  %89 = vset.pattern.permute.xlu0 0
  %90 = vperm.xlu0 %89, %v31
  %v91 = vpop.permute.xlu0 %90
  %92 = vset.pattern.permute.xlu0 0
  %93 = vperm.xlu0 %92, %v32
  %v94 = vpop.permute.xlu0 %93
  %95 = vset.pattern.permute.xlu0 0
  %96 = vperm.xlu0 %95, %v33
  %v97 = vpop.permute.xlu0 %96
  %98 = vset.pattern.permute.xlu0 0
  %99 = vperm.xlu0 %98, %v34
  %v100 = vpop.permute.xlu0 %99
  %vm101 = vcmp.eq.s32.totalorder %v52, %v55
  %vm102 = vcmp.eq.s32.totalorder %v52, %v58
  %vm103 = vcmp.eq.s32.totalorder %v52, %v61
  %vm104 = vcmp.eq.s32.totalorder %v52, %v64
  %vm105 = vcmp.eq.s32.totalorder %v52, %v67
  %vm106 = vcmp.eq.s32.totalorder %v52, %v70
  %vm107 = vcmp.eq.s32.totalorder %v52, %v73
  %vm108 = vcmp.eq.s32.totalorder %v52, %v76
  %vm109 = vcmp.eq.s32.totalorder %v52, %v79
  %vm110 = vcmp.eq.s32.totalorder %v52, %v82
  %vm111 = vcmp.eq.s32.totalorder %v52, %v85
  %vm112 = vcmp.eq.s32.totalorder %v52, %v88
  %vm113 = vcmp.eq.s32.totalorder %v52, %v91
  %vm114 = vcmp.eq.s32.totalorder %v52, %v94
  %vm115 = vcmp.eq.s32.totalorder %v52, %v97
  %vm116 = vcmp.eq.s32.totalorder %v52, %v100
  %117 = vset.pattern.permute.xlu0 0
  %118 = vperm.xlu0 %117, %v35
  %v119 = vpop.permute.xlu0 %118
  %120 = vset.pattern.permute.xlu0 0
  %121 = vperm.xlu0 %120, %v36
  %v122 = vpop.permute.xlu0 %121
  %123 = vset.pattern.permute.xlu0 0
  %124 = vperm.xlu0 %123, %v37
  %v125 = vpop.permute.xlu0 %124
  %126 = vset.pattern.permute.xlu0 0
  %127 = vperm.xlu0 %126, %v38
  %v128 = vpop.permute.xlu0 %127
  %129 = vset.pattern.permute.xlu0 0
  %130 = vperm.xlu0 %129, %v39
  %v131 = vpop.permute.xlu0 %130
  %132 = vset.pattern.permute.xlu0 0
  %133 = vperm.xlu0 %132, %v40
  %v134 = vpop.permute.xlu0 %133
  %135 = vset.pattern.permute.xlu0 0
  %136 = vperm.xlu0 %135, %v41
  %v137 = vpop.permute.xlu0 %136
  %138 = vset.pattern.permute.xlu0 0
  %139 = vperm.xlu0 %138, %v42
  %v140 = vpop.permute.xlu0 %139
  %141 = vset.pattern.permute.xlu0 0
  %142 = vperm.xlu0 %141, %v43
  %v143 = vpop.permute.xlu0 %142
  %144 = vset.pattern.permute.xlu0 0
  %145 = vperm.xlu0 %144, %v44
  %v146 = vpop.permute.xlu0 %145
  %147 = vset.pattern.permute.xlu0 0
  %148 = vperm.xlu0 %147, %v45
  %v149 = vpop.permute.xlu0 %148
  %150 = vset.pattern.permute.xlu0 0
  %151 = vperm.xlu0 %150, %v46
  %v152 = vpop.permute.xlu0 %151
  %153 = vset.pattern.permute.xlu0 0
  %154 = vperm.xlu0 %153, %v47
  %v155 = vpop.permute.xlu0 %154
  %156 = vset.pattern.permute.xlu0 0
  %157 = vperm.xlu0 %156, %v48
  %v158 = vpop.permute.xlu0 %157
  %159 = vset.pattern.permute.xlu0 0
  %160 = vperm.xlu0 %159, %v49
  %v161 = vpop.permute.xlu0 %160
  %162 = vset.pattern.permute.xlu0 0
  %163 = vperm.xlu0 %162, %v50
  %v164 = vpop.permute.xlu0 %163
  %vm165 = vcmp.eq.s32.totalorder %v52, %v119
  %vm166 = vcmp.eq.s32.totalorder %v52, %v122
  %vm167 = vcmp.eq.s32.totalorder %v52, %v125
  %vm168 = vcmp.eq.s32.totalorder %v52, %v128
  %vm169 = vcmp.eq.s32.totalorder %v52, %v131
  %vm170 = vcmp.eq.s32.totalorder %v52, %v134
  %vm171 = vcmp.eq.s32.totalorder %v52, %v137
  %vm172 = vcmp.eq.s32.totalorder %v52, %v140
  %vm173 = vcmp.eq.s32.totalorder %v52, %v143
  %vm174 = vcmp.eq.s32.totalorder %v52, %v146
  %vm175 = vcmp.eq.s32.totalorder %v52, %v149
  %vm176 = vcmp.eq.s32.totalorder %v52, %v152
  %vm177 = vcmp.eq.s32.totalorder %v52, %v155
  %vm178 = vcmp.eq.s32.totalorder %v52, %v158
  %vm179 = vcmp.eq.s32.totalorder %v52, %v161
  %vm180 = vcmp.eq.s32.totalorder %v52, %v164
  %v181 = vsel %vm101, 1, 0
  %v182 = vsel %vm102, 1, 0
  %v183 = vsel %vm103, 1, 0
  %v184 = vsel %vm104, 1, 0
  %v185 = vsel %vm105, 1, 0
  %v186 = vsel %vm106, 1, 0
  %v187 = vsel %vm107, 1, 0
  %v188 = vsel %vm108, 1, 0
  %v189 = vsel %vm109, 1, 0
  %v190 = vsel %vm110, 1, 0
  %v191 = vsel %vm111, 1, 0
  %v192 = vsel %vm112, 1, 0
  %v193 = vsel %vm113, 1, 0
  %v194 = vsel %vm114, 1, 0
  %v195 = vsel %vm115, 1, 0
  %v196 = vsel %vm116, 1, 0
  %v197 = vcvt.s32.f32 %v181
  %v198 = vcvt.s32.f32 %v182
  %v199 = vcvt.s32.f32 %v183
  %v200 = vcvt.s32.f32 %v184
  %v201 = vcvt.s32.f32 %v185
  %v202 = vcvt.s32.f32 %v186
  %v203 = vcvt.s32.f32 %v187
  %v204 = vcvt.s32.f32 %v188
  %v205 = vcvt.s32.f32 %v189
  %v206 = vcvt.s32.f32 %v190
  %v207 = vcvt.s32.f32 %v191
  %v208 = vcvt.s32.f32 %v192
  %v209 = vcvt.s32.f32 %v193
  %v210 = vcvt.s32.f32 %v194
  %v211 = vcvt.s32.f32 %v195
  %v212 = vcvt.s32.f32 %v196
  %v213 = vld [vmem:[%s2] sm:$0xff]
  %v214 = vld [vmem:[%s2 + $0x8] sm:$0xff]
  %v215 = vld [vmem:[%s2 + $0x10] sm:$0xff]
  %v216 = vld [vmem:[%s2 + $0x18] sm:$0xff]
  %vm217 = vcmask 261120
  %v219 = vsel %vm217, %v197, 0
  %v222 = vsel %vm217, %v198, 0
  %v225 = vsel %vm217, %v199, 0
  %v228 = vsel %vm217, %v200, 0
  %v231 = vsel %vm217, %v201, 0
  %v234 = vsel %vm217, %v202, 0
  %v237 = vsel %vm217, %v203, 0
  %v240 = vsel %vm217, %v204, 0
  %v243 = vsel %vm217, %v205, 0
  %v246 = vsel %vm217, %v206, 0
  %v249 = vsel %vm217, %v207, 0
  %v252 = vsel %vm217, %v208, 0
  %v255 = vsel %vm217, %v209, 0
  %v258 = vsel %vm217, %v210, 0
  %v261 = vsel %vm217, %v211, 0
  %v264 = vsel %vm217, %v212, 0
  %266 = vmatprep.subr.mxu0 0.0
  %267 = vmatpush1.msra.mxu0 0.0
  %268 = vmatprep.subr.mxu0 0.0
  %269 = vmatpush1.msra.mxu0 0.0
  %270 = vmatprep.subr.mxu0 0.0
  %271 = vmatpush1.msra.mxu0 0.0
  %272 = vmatprep.subr.mxu0 0.0
  %273 = vmatpush1.msra.mxu0 0.0
  %274 = vmatprep.subr.mxu0 0.0
  %275 = vmatpush1.msra.mxu0 0.0
  %276 = vmatprep.subr.mxu0 0.0
  %277 = vmatpush1.msra.mxu0 0.0
  %278 = vmatprep.subr.mxu0 0.0
  %279 = vmatpush1.msra.mxu0 0.0
  %280 = vmatprep.subr.mxu0 0.0
  %281 = vmatpush1.msra.mxu0 0.0
  %282 = vmatprep.subr.mxu0 0.0
  %283 = vmatpush1.msra.mxu0 0.0
  %284 = vmatprep.subr.mxu0 0.0
  %285 = vmatpush1.msra.mxu0 0.0
  %286 = vmatprep.subr.mxu0 0.0
  %287 = vmatpush1.msra.mxu0 0.0
  %288 = vmatprep.subr.mxu0 0.0
  %289 = vmatpush1.msra.mxu0 0.0
  %290 = vmatprep.subr.mxu0 0.0
  %291 = vmatpush1.msra.mxu0 %v216
  %292 = vmatprep.subr.mxu0 0.0
  %293 = vmatpush1.msra.mxu0 %v215
  %294 = vmatprep.subr.mxu0 0.0
  %295 = vmatpush1.msra.mxu0 %v214
  %296 = vmatprep.subr.mxu0 0.0
  %297 = vmatpush1.msra.mxu0 %v213
  %298 = vmatprep.subr.mxu0 0.0
  %299 = vmatpush2.msra.mxu0 0.0
  %300 = vmatprep.subr.mxu0 0.0
  %301 = vmatpush2.msra.mxu0 0.0
  %302 = vmatprep.subr.mxu0 0.0
  %303 = vmatpush2.msra.mxu0 0.0
  %304 = vmatprep.subr.mxu0 0.0
  %305 = vmatpush2.msra.mxu0 0.0
  %306 = vmatprep.subr.mxu0 0.0
  %307 = vmatpush2.msra.mxu0 0.0
  %308 = vmatprep.subr.mxu0 0.0
  %309 = vmatpush2.msra.mxu0 0.0
  %310 = vmatprep.subr.mxu0 0.0
  %311 = vmatpush2.msra.mxu0 0.0
  %312 = vmatprep.subr.mxu0 0.0
  %313 = vmatpush2.msra.mxu0 0.0
  %314 = vmatprep.subr.mxu0 0.0
  %315 = vmatpush2.msra.mxu0 0.0
  %316 = vmatprep.subr.mxu0 0.0
  %317 = vmatpush2.msra.mxu0 0.0
  %318 = vmatprep.subr.mxu0 0.0
  %319 = vmatpush2.msra.mxu0 0.0
  %320 = vmatprep.subr.mxu0 0.0
  %321 = vmatpush2.msra.mxu0 0.0
  %322 = vmatprep.subr.mxu0 0.0
  %323 = vmatpush2.msra.mxu0 0.0
  %324 = vmatprep.subr.mxu0 0.0
  %325 = vmatpush2.msra.mxu0 0.0
  %326 = vmatprep.subr.mxu0 0.0
  %327 = vmatpush2.msra.mxu0 0.0
  %328 = vmatprep.subr.mxu0 0.0
  %329 = vmatpush2.msra.mxu0 0.0
  %330 = vmatprep.mubr.f32.mxu0 0.0
  %331 = vmatmul.mubr.f32.gmra.mxu0 %v219
  %v332 = vpop.f32.mrf.mxu0
  %v333 = vadd.f32 0.0, %v332
  %v334 = vpop.f32.mrf.mxu0
  %335 = vmatprep.mubr.f32.mxu0 0.0
  %336 = vmatmul.mubr.f32.gmra.mxu0 %v222
  %v337 = vpop.f32.mrf.mxu0
  %v338 = vadd.f32 0.0, %v337
  %v339 = vpop.f32.mrf.mxu0
  %340 = vmatprep.mubr.f32.mxu0 0.0
  %341 = vmatmul.mubr.f32.gmra.mxu0 %v225
  %v342 = vpop.f32.mrf.mxu0
  %v343 = vadd.f32 0.0, %v342
  %v344 = vpop.f32.mrf.mxu0
  %345 = vmatprep.mubr.f32.mxu0 0.0
  %346 = vmatmul.mubr.f32.gmra.mxu0 %v228
  %v347 = vpop.f32.mrf.mxu0
  %v348 = vadd.f32 0.0, %v347
  %v349 = vpop.f32.mrf.mxu0
  %350 = vmatprep.mubr.f32.mxu0 0.0
  %351 = vmatmul.mubr.f32.gmra.mxu0 %v231
  %v352 = vpop.f32.mrf.mxu0
  %v353 = vadd.f32 0.0, %v352
  %v354 = vpop.f32.mrf.mxu0
  %355 = vmatprep.mubr.f32.mxu0 0.0
  %356 = vmatmul.mubr.f32.gmra.mxu0 %v234
  %v357 = vpop.f32.mrf.mxu0
  %v358 = vadd.f32 0.0, %v357
  %v359 = vpop.f32.mrf.mxu0
  %360 = vmatprep.mubr.f32.mxu0 0.0
  %361 = vmatmul.mubr.f32.gmra.mxu0 %v237
  %v362 = vpop.f32.mrf.mxu0
  %v363 = vadd.f32 0.0, %v362
  %v364 = vpop.f32.mrf.mxu0
  %365 = vmatprep.mubr.f32.mxu0 0.0
  %366 = vmatmul.mubr.f32.gmra.mxu0 %v240
  %v367 = vpop.f32.mrf.mxu0
  %v368 = vadd.f32 0.0, %v367
  %v369 = vpop.f32.mrf.mxu0
  %370 = vmatprep.mubr.f32.mxu0 0.0
  %371 = vmatmul.mubr.f32.gmra.mxu0 %v243
  %v372 = vpop.f32.mrf.mxu0
  %v373 = vadd.f32 0.0, %v372
  %v374 = vpop.f32.mrf.mxu0
  %375 = vmatprep.mubr.f32.mxu0 0.0
  %376 = vmatmul.mubr.f32.gmra.mxu0 %v246
  %v377 = vpop.f32.mrf.mxu0
  %v378 = vadd.f32 0.0, %v377
  %v379 = vpop.f32.mrf.mxu0
  %380 = vmatprep.mubr.f32.mxu0 0.0
  %381 = vmatmul.mubr.f32.gmra.mxu0 %v249
  %v382 = vpop.f32.mrf.mxu0
  %v383 = vadd.f32 0.0, %v382
  %v384 = vpop.f32.mrf.mxu0
  %385 = vmatprep.mubr.f32.mxu0 0.0
  %386 = vmatmul.mubr.f32.gmra.mxu0 %v252
  %v387 = vpop.f32.mrf.mxu0
  %v388 = vadd.f32 0.0, %v387
  %v389 = vpop.f32.mrf.mxu0
  %390 = vmatprep.mubr.f32.mxu0 0.0
  %391 = vmatmul.mubr.f32.gmra.mxu0 %v255
  %v392 = vpop.f32.mrf.mxu0
  %v393 = vadd.f32 0.0, %v392
  %v394 = vpop.f32.mrf.mxu0
  %395 = vmatprep.mubr.f32.mxu0 0.0
  %396 = vmatmul.mubr.f32.gmra.mxu0 %v258
  %v397 = vpop.f32.mrf.mxu0
  %v398 = vadd.f32 0.0, %v397
  %v399 = vpop.f32.mrf.mxu0
  %400 = vmatprep.mubr.f32.mxu0 0.0
  %401 = vmatmul.mubr.f32.gmra.mxu0 %v261
  %v402 = vpop.f32.mrf.mxu0
  %v403 = vadd.f32 0.0, %v402
  %v404 = vpop.f32.mrf.mxu0
  %405 = vmatprep.mubr.f32.mxu0 0.0
  %406 = vmatmul.mubr.f32.gmra.mxu0 %v264
  %v407 = vpop.f32.mrf.mxu0
  %v408 = vadd.f32 0.0, %v407
  %v409 = vpop.f32.mrf.mxu0
  %410 = vdwg.mxu0
  %v411 = vsel %vm165, 1, 0
  %v412 = vsel %vm166, 1, 0
  %v413 = vsel %vm167, 1, 0
  %v414 = vsel %vm168, 1, 0
  %v415 = vsel %vm169, 1, 0
  %v416 = vsel %vm170, 1, 0
  %v417 = vsel %vm171, 1, 0
  %v418 = vsel %vm172, 1, 0
  %v419 = vsel %vm173, 1, 0
  %v420 = vsel %vm174, 1, 0
  %v421 = vsel %vm175, 1, 0
  %v422 = vsel %vm176, 1, 0
  %v423 = vsel %vm177, 1, 0
  %v424 = vsel %vm178, 1, 0
  %v425 = vsel %vm179, 1, 0
  %v426 = vsel %vm180, 1, 0
  %v427 = vcvt.s32.f32 %v411
  %v428 = vcvt.s32.f32 %v412
  %v429 = vcvt.s32.f32 %v413
  %v430 = vcvt.s32.f32 %v414
  %v431 = vcvt.s32.f32 %v415
  %v432 = vcvt.s32.f32 %v416
  %v433 = vcvt.s32.f32 %v417
  %v434 = vcvt.s32.f32 %v418
  %v435 = vcvt.s32.f32 %v419
  %v436 = vcvt.s32.f32 %v420
  %v437 = vcvt.s32.f32 %v421
  %v438 = vcvt.s32.f32 %v422
  %v439 = vcvt.s32.f32 %v423
  %v440 = vcvt.s32.f32 %v424
  %v441 = vcvt.s32.f32 %v425
  %v442 = vcvt.s32.f32 %v426
  %v443 = vld [vmem:[%s3] sm:$0xff]
  %v444 = vld [vmem:[%s3 + $0x8] sm:$0xff]
  %v445 = vld [vmem:[%s3 + $0x10] sm:$0xff]
  %v446 = vld [vmem:[%s3 + $0x18] sm:$0xff]
  %v447 = vld [vmem:[%s3 + $0x20] sm:$0xff]
  %v448 = vld [vmem:[%s3 + $0x28] sm:$0xff]
  %vm449 = vcmask 392192
  %v451 = vsel %vm449, %v427, 0
  %v454 = vsel %vm449, %v428, 0
  %v457 = vsel %vm449, %v429, 0
  %v460 = vsel %vm449, %v430, 0
  %v463 = vsel %vm449, %v431, 0
  %v466 = vsel %vm449, %v432, 0
  %v469 = vsel %vm449, %v433, 0
  %v472 = vsel %vm449, %v434, 0
  %v475 = vsel %vm449, %v435, 0
  %v478 = vsel %vm449, %v436, 0
  %v481 = vsel %vm449, %v437, 0
  %v484 = vsel %vm449, %v438, 0
  %v487 = vsel %vm449, %v439, 0
  %v490 = vsel %vm449, %v440, 0
  %v493 = vsel %vm449, %v441, 0
  %v496 = vsel %vm449, %v442, 0
  %498 = vmatprep.subr.mxu0 0.0
  %499 = vmatpush1.msra.mxu0 0.0
  %500 = vmatprep.subr.mxu0 0.0
  %501 = vmatpush1.msra.mxu0 0.0
  %502 = vmatprep.subr.mxu0 0.0
  %503 = vmatpush1.msra.mxu0 0.0
  %504 = vmatprep.subr.mxu0 0.0
  %505 = vmatpush1.msra.mxu0 0.0
  %506 = vmatprep.subr.mxu0 0.0
  %507 = vmatpush1.msra.mxu0 0.0
  %508 = vmatprep.subr.mxu0 0.0
  %509 = vmatpush1.msra.mxu0 0.0
  %510 = vmatprep.subr.mxu0 0.0
  %511 = vmatpush1.msra.mxu0 0.0
  %512 = vmatprep.subr.mxu0 0.0
  %513 = vmatpush1.msra.mxu0 0.0
  %514 = vmatprep.subr.mxu0 0.0
  %515 = vmatpush1.msra.mxu0 0.0
  %516 = vmatprep.subr.mxu0 0.0
  %517 = vmatpush1.msra.mxu0 0.0
  %518 = vmatprep.subr.mxu0 0.0
  %519 = vmatpush1.msra.mxu0 %v448
  %520 = vmatprep.subr.mxu0 0.0
  %521 = vmatpush1.msra.mxu0 %v447
  %522 = vmatprep.subr.mxu0 0.0
  %523 = vmatpush1.msra.mxu0 %v446
  %524 = vmatprep.subr.mxu0 0.0
  %525 = vmatpush1.msra.mxu0 %v445
  %526 = vmatprep.subr.mxu0 0.0
  %527 = vmatpush1.msra.mxu0 %v444
  %528 = vmatprep.subr.mxu0 0.0
  %529 = vmatpush1.msra.mxu0 %v443
  %530 = vmatprep.subr.mxu0 0.0
  %531 = vmatpush2.msra.mxu0 0.0
  %532 = vmatprep.subr.mxu0 0.0
  %533 = vmatpush2.msra.mxu0 0.0
  %534 = vmatprep.subr.mxu0 0.0
  %535 = vmatpush2.msra.mxu0 0.0
  %536 = vmatprep.subr.mxu0 0.0
  %537 = vmatpush2.msra.mxu0 0.0
  %538 = vmatprep.subr.mxu0 0.0
  %539 = vmatpush2.msra.mxu0 0.0
  %540 = vmatprep.subr.mxu0 0.0
  %541 = vmatpush2.msra.mxu0 0.0
  %542 = vmatprep.subr.mxu0 0.0
  %543 = vmatpush2.msra.mxu0 0.0
  %544 = vmatprep.subr.mxu0 0.0
  %545 = vmatpush2.msra.mxu0 0.0
  %546 = vmatprep.subr.mxu0 0.0
  %547 = vmatpush2.msra.mxu0 0.0
  %548 = vmatprep.subr.mxu0 0.0
  %549 = vmatpush2.msra.mxu0 0.0
  %550 = vmatprep.subr.mxu0 0.0
  %551 = vmatpush2.msra.mxu0 0.0
  %552 = vmatprep.subr.mxu0 0.0
  %553 = vmatpush2.msra.mxu0 0.0
  %554 = vmatprep.subr.mxu0 0.0
  %555 = vmatpush2.msra.mxu0 0.0
  %556 = vmatprep.subr.mxu0 0.0
  %557 = vmatpush2.msra.mxu0 0.0
  %558 = vmatprep.subr.mxu0 0.0
  %559 = vmatpush2.msra.mxu0 0.0
  %560 = vmatprep.subr.mxu0 0.0
  %561 = vmatpush2.msra.mxu0 0.0
  %562 = vmatprep.mubr.f32.mxu0 0.0
  %563 = vmatmul.mubr.f32.gmra.mxu0 %v451
  %v564 = vpop.f32.mrf.mxu0
  %v565 = vadd.f32 0.0, %v564
  %v566 = vpop.f32.mrf.mxu0
  %567 = vmatprep.mubr.f32.mxu0 0.0
  %568 = vmatmul.mubr.f32.gmra.mxu0 %v454
  %v569 = vpop.f32.mrf.mxu0
  %v570 = vadd.f32 0.0, %v569
  %v571 = vpop.f32.mrf.mxu0
  %572 = vmatprep.mubr.f32.mxu0 0.0
  %573 = vmatmul.mubr.f32.gmra.mxu0 %v457
  %v574 = vpop.f32.mrf.mxu0
  %v575 = vadd.f32 0.0, %v574
  %v576 = vpop.f32.mrf.mxu0
  %577 = vmatprep.mubr.f32.mxu0 0.0
  %578 = vmatmul.mubr.f32.gmra.mxu0 %v460
  %v579 = vpop.f32.mrf.mxu0
  %v580 = vadd.f32 0.0, %v579
  %v581 = vpop.f32.mrf.mxu0
  %582 = vmatprep.mubr.f32.mxu0 0.0
  %583 = vmatmul.mubr.f32.gmra.mxu0 %v463
  %v584 = vpop.f32.mrf.mxu0
  %v585 = vadd.f32 0.0, %v584
  %v586 = vpop.f32.mrf.mxu0
  %587 = vmatprep.mubr.f32.mxu0 0.0
  %588 = vmatmul.mubr.f32.gmra.mxu0 %v466
  %v589 = vpop.f32.mrf.mxu0
  %v590 = vadd.f32 0.0, %v589
  %v591 = vpop.f32.mrf.mxu0
  %592 = vmatprep.mubr.f32.mxu0 0.0
  %593 = vmatmul.mubr.f32.gmra.mxu0 %v469
  %v594 = vpop.f32.mrf.mxu0
  %v595 = vadd.f32 0.0, %v594
  %v596 = vpop.f32.mrf.mxu0
  %597 = vmatprep.mubr.f32.mxu0 0.0
  %598 = vmatmul.mubr.f32.gmra.mxu0 %v472
  %v599 = vpop.f32.mrf.mxu0
  %v600 = vadd.f32 0.0, %v599
  %v601 = vpop.f32.mrf.mxu0
  %602 = vmatprep.mubr.f32.mxu0 0.0
  %603 = vmatmul.mubr.f32.gmra.mxu0 %v475
  %v604 = vpop.f32.mrf.mxu0
  %v605 = vadd.f32 0.0, %v604
  %v606 = vpop.f32.mrf.mxu0
  %607 = vmatprep.mubr.f32.mxu0 0.0
  %608 = vmatmul.mubr.f32.gmra.mxu0 %v478
  %v609 = vpop.f32.mrf.mxu0
  %v610 = vadd.f32 0.0, %v609
  %v611 = vpop.f32.mrf.mxu0
  %612 = vmatprep.mubr.f32.mxu0 0.0
  %613 = vmatmul.mubr.f32.gmra.mxu0 %v481
  %v614 = vpop.f32.mrf.mxu0
  %v615 = vadd.f32 0.0, %v614
  %v616 = vpop.f32.mrf.mxu0
  %617 = vmatprep.mubr.f32.mxu0 0.0
  %618 = vmatmul.mubr.f32.gmra.mxu0 %v484
  %v619 = vpop.f32.mrf.mxu0
  %v620 = vadd.f32 0.0, %v619
  %v621 = vpop.f32.mrf.mxu0
  %622 = vmatprep.mubr.f32.mxu0 0.0
  %623 = vmatmul.mubr.f32.gmra.mxu0 %v487
  %v624 = vpop.f32.mrf.mxu0
  %v625 = vadd.f32 0.0, %v624
  %v626 = vpop.f32.mrf.mxu0
  %627 = vmatprep.mubr.f32.mxu0 0.0
  %628 = vmatmul.mubr.f32.gmra.mxu0 %v490
  %v629 = vpop.f32.mrf.mxu0
  %v630 = vadd.f32 0.0, %v629
  %v631 = vpop.f32.mrf.mxu0
  %632 = vmatprep.mubr.f32.mxu0 0.0
  %633 = vmatmul.mubr.f32.gmra.mxu0 %v493
  %v634 = vpop.f32.mrf.mxu0
  %v635 = vadd.f32 0.0, %v634
  %v636 = vpop.f32.mrf.mxu0
  %637 = vmatprep.mubr.f32.mxu0 0.0
  %638 = vmatmul.mubr.f32.gmra.mxu0 %v496
  %v639 = vpop.f32.mrf.mxu0
  %v640 = vadd.f32 0.0, %v639
  %v641 = vpop.f32.mrf.mxu0
  %642 = vdwg.mxu0
  %vm643 = vcmask 31744
  %644 = vst.msk [vmem:[%s4] sm:$0xff] %vm643, %v333
  %645 = vst.msk [vmem:[%s4 + $0x8] sm:$0xff] %vm643, %v338
  %646 = vst.msk [vmem:[%s4 + $0x10] sm:$0xff] %vm643, %v343
  %647 = vst.msk [vmem:[%s4 + $0x18] sm:$0xff] %vm643, %v348
  %648 = vst.msk [vmem:[%s4 + $0x20] sm:$0xff] %vm643, %v353
  %649 = vst.msk [vmem:[%s4 + $0x28] sm:$0xff] %vm643, %v358
  %650 = vst.msk [vmem:[%s4 + $0x30] sm:$0xff] %vm643, %v363
  %651 = vst.msk [vmem:[%s4 + $0x38] sm:$0xff] %vm643, %v368
  %652 = vst.msk [vmem:[%s4 + $0x40] sm:$0xff] %vm643, %v373
  %653 = vst.msk [vmem:[%s4 + $0x48] sm:$0xff] %vm643, %v378
  %654 = vst.msk [vmem:[%s4 + $0x50] sm:$0xff] %vm643, %v383
  %655 = vst.msk [vmem:[%s4 + $0x58] sm:$0xff] %vm643, %v388
  %656 = vst.msk [vmem:[%s4 + $0x60] sm:$0xff] %vm643, %v393
  %657 = vst.msk [vmem:[%s4 + $0x68] sm:$0xff] %vm643, %v398
  %658 = vst.msk [vmem:[%s4 + $0x70] sm:$0xff] %vm643, %v403
  %659 = vst.msk [vmem:[%s4 + $0x78] sm:$0xff] %vm643, %v408
  %660 = vst.msk [vmem:[%s5] sm:$0xff] %vm643, %v565
  %661 = vst.msk [vmem:[%s5 + $0x8] sm:$0xff] %vm643, %v570
  %662 = vst.msk [vmem:[%s5 + $0x10] sm:$0xff] %vm643, %v575
  %663 = vst.msk [vmem:[%s5 + $0x18] sm:$0xff] %vm643, %v580
  %664 = vst.msk [vmem:[%s5 + $0x20] sm:$0xff] %vm643, %v585
  %665 = vst.msk [vmem:[%s5 + $0x28] sm:$0xff] %vm643, %v590
  %666 = vst.msk [vmem:[%s5 + $0x30] sm:$0xff] %vm643, %v595
  %667 = vst.msk [vmem:[%s5 + $0x38] sm:$0xff] %vm643, %v600
  %668 = vst.msk [vmem:[%s5 + $0x40] sm:$0xff] %vm643, %v605
  %669 = vst.msk [vmem:[%s5 + $0x48] sm:$0xff] %vm643, %v610
  %670 = vst.msk [vmem:[%s5 + $0x50] sm:$0xff] %vm643, %v615
  %671 = vst.msk [vmem:[%s5 + $0x58] sm:$0xff] %vm643, %v620
  %672 = vst.msk [vmem:[%s5 + $0x60] sm:$0xff] %vm643, %v625
  %673 = vst.msk [vmem:[%s5 + $0x68] sm:$0xff] %vm643, %v630
  %674 = vst.msk [vmem:[%s5 + $0x70] sm:$0xff] %vm643, %v635
  %675 = vst.msk [vmem:[%s5 + $0x78] sm:$0xff] %vm643, %v640
  // Predicated region
  $region18: #{tpu_custom_call.1} parent=0 // pred_check
    _
  $region19: #{tpu_custom_call.1} parent=0 // pred_check_branch
    %677 = sbr.rel (0) target = $region21
  $region20: #{tpu_custom_call.1} parent=0 // pred_region
    _
  $region21: #{tpu_custom_call.1} parent=0 // pred_fallthru
    _
  // Predicated region
  $region22: #{tpu_custom_call.1} parent=0 // pred_check
    _
  $region23: #{tpu_custom_call.1} parent=0 // pred_check_branch
    %679 = sbr.rel (0) target = $region25
  $region24: #{tpu_custom_call.1} parent=0 // pred_region
    _
  $region25: #{tpu_custom_call.1} parent=0 // pred_fallthru
    _
  // Predicated region
  $region26: #{tpu_custom_call.1} parent=0 // pred_check
    _
  $region27: #{tpu_custom_call.1} parent=0 // pred_check_branch
    %681 = sbr.rel (0) target = $region29
  $region28: #{tpu_custom_call.1} parent=0 // pred_region
    _
  $region29: #{tpu_custom_call.1} parent=0 // pred_fallthru
    _
  // Predicated region
  $region30: #{tpu_custom_call.1} parent=0 // pred_check
    _
  $region31: #{tpu_custom_call.1} parent=0 // pred_check_branch
    %683 = sbr.rel (0) target = $region33
  $region32: #{tpu_custom_call.1} parent=0 // pred_region
    _
  $region33: #{tpu_custom_call.1} parent=0 // pred_fallthru
    _

</llo_original>
